<compile_context>
chip_gen: v5e
topology: v5e:2x2
jax: 0.10.0
libtpu: 0.0.40
codegen_flags: <defaults>
</compile_context>

<pallas_src>
import jax
import jax.numpy as jnp
from jax import lax
from jax.experimental import pallas as pl
from jax.experimental.pallas import tpu as pltpu


def _round_up(a, b):
    return -(-a // b) * b


def make_mlp_kernel(layer_dims, chunk):
    """layer_dims = [in_dim, n0, ..., out_dim]; chunk = lanes per inner iteration.

    Kernel refs: (x_ref, w0, w1, ..., w_last, b_packed_ref, o_ref) with
      x_ref   : (in_dim, T)       activations, batch on lanes
      w0      : (n0, in_dim)      first layer (in_dim == 2, VPU rank-2 update)
      w_i     : (n_i, n_{i-1})    hidden layers (MXU, W @ h)
      w_last  : (n_last, 1)       last layer transposed (out_dim == 1, VPU + reduce)
      b_packed: (sum(pad8(out_i)), 1)  biases packed, each segment 8-row aligned
      o_ref   : (1, T)            lane-dense output
    """
    num_layers = len(layer_dims) - 1
    bias_offsets = []
    off = 0
    for i in range(num_layers):
        bias_offsets.append(off)
        off += _round_up(layer_dims[i + 1], 8)   # 8-aligned segments: no sublane shuffles

    def kernel(x_ref, *refs):
        o_ref = refs[-1]
        b_ref = refs[-2]
        w_refs = refs[:-2]
        tile = x_ref.shape[1]
        n_chunks = tile // chunk                 # static

        def run_chunk(start):
            x = x_ref[:, pl.ds(start, chunk)].astype(jnp.float32)          # (2, C)

            # Layer 0 (K = 2): two broadcast FMAs on the VPU, skip the MXU entirely.
            w0 = w_refs[0][...]                                             # (n0, 2)
            b0 = b_ref[bias_offsets[0]:bias_offsets[0] + layer_dims[1], :]  # (n0, 1)
            h = w0[:, 0:1] * x[0:1, :] + w0[:, 1:2] * x[1:2, :] + b0
            h = jnp.maximum(h, 0.0)

            # Hidden layers: W_i @ h on the MXU (chunk lanes fill the output axis).
            # Default f32 dot precision matches the JAX reference; pin
            # precision=HIGHEST here (and in the reference) if bit-level fidelity
            # for much wider hidden layers is required.
            for i in range(1, num_layers - 1):
                w = w_refs[i][...]                                          # (n_i, n_{i-1})
                b = b_ref[bias_offsets[i]:bias_offsets[i] + layer_dims[i + 1], :]
                h = jnp.dot(w, h, preferred_element_type=jnp.float32) + b
                h = jnp.maximum(h, 0.0)

            # Last layer (out_dim = 1): VPU multiply + cross-sublane reduce (XLU),
            # avoiding an M=1 matmul that would waste the MXU.
            wl = w_refs[num_layers - 1][...]                                # (n_last, 1)
            bl = b_ref[bias_offsets[-1]:bias_offsets[-1] + layer_dims[-1], :]
            y = jnp.sum(wl * h, axis=0, keepdims=True) + bl                 # (1, C)
            o_ref[:, pl.ds(start, chunk)] = y.astype(o_ref.dtype)

        if n_chunks == 1:
            run_chunk(0)
        else:
            # Inner lane-chunk loop: bounds the live activation set to ~max_width
            # * chunk f32 (fits in vregs) even when the grid tile is tens of
            # thousands of lanes.
            def body(c, carry):
                run_chunk(pl.multiple_of(c * chunk, chunk))
                return carry
            lax.fori_loop(0, n_chunks, body, 0)

    return kernel


def nn_general_forward(x, weights, biases, *, batch_tile=None):
    """Pallas forward for NN_General.

    x:       (B, 2) float32
    weights: torch-convention weights, weights[i] has shape (out_i, in_i)
    biases:  torch-convention biases,  biases[i]  has shape (out_i,)
    Returns (B, 1) float32, matching `nn.Sequential(Linear, ReLU, ..., Linear)(x)`.
    """
    B, in_dim = x.shape
    assert in_dim == 2, "NN_General takes 2 input features"
    assert len(weights) >= 2, "NN_General always has at least one hidden layer"
    layer_dims = [in_dim] + [int(w.shape[0]) for w in weights]
    assert layer_dims[-1] == 1, "NN_General has a single output feature"
    for w_prev, w in zip(weights[:-1], weights[1:]):
        assert w.shape[1] == w_prev.shape[0]

    # Lane-chunk size: keep the per-chunk activation (max_width x chunk f32) at
    # roughly <=16 vregs so two live h buffers still fit in the 64-vreg file.
    max_width = max(layer_dims[1:])
    chunk = max(128, min(512, (16384 // max(1, max_width)) // 128 * 128))

    # Batch tile: large enough to amortize the ~0.35us/grid-step fixed cost
    # (hundreds of KiB of HBM traffic per step), multiple of `chunk`, and —
    # when there is enough work — at least 2 grid steps so the "parallel" batch
    # axis can shard across v7x's two TensorCores.
    target = 32768 if batch_tile is None else int(batch_tile)
    target = max(chunk, (target // chunk) * chunk)
    b_ceil = _round_up(B, chunk)
    if b_ceil <= 2 * chunk:
        tile = b_ceil                                   # tiny batch: single step
    elif b_ceil <= 2 * target:
        tile = _round_up((b_ceil + 1) // 2, chunk)      # exactly 2 big steps
    else:
        tile = target                                   # >= 3 steps of ~target lanes

    padded_B = _round_up(B, tile)
    grid = (padded_B // tile,)

    # TODO(synk): for repeated calls (training/eval loops) keep activations
    # persistently in the (2, B) / (1, B) layout to drop these wrapper pad /
    # transpose / reshape HBM passes entirely.
    xp = x.astype(jnp.float32)
    if padded_B != B:
        xp = jnp.pad(xp, ((0, padded_B - B), (0, 0)))
    x_t = xp.T                                                  # (2, padded_B)

    # Kernel-layout params: first/hidden weights stay (out, in); last weight is
    # transposed to (n_last, 1); biases are packed into one column array with
    # each segment padded to a multiple of 8 rows (sublane-aligned slices).
    kweights = [jnp.asarray(w, jnp.float32) for w in weights[:-1]]
    kweights.append(jnp.asarray(weights[-1], jnp.float32).T)
    segs = []
    for b in biases:
        col = jnp.asarray(b, jnp.float32).reshape(-1, 1)
        pad = (-col.shape[0]) % 8
        if pad:
            col = jnp.pad(col, ((0, pad), (0, 0)))
        segs.append(col)
    b_packed = jnp.concatenate(segs, axis=0)

    in_specs = [pl.BlockSpec((in_dim, tile), lambda i: (0, i))]
    for w in kweights:
        in_specs.append(pl.BlockSpec(w.shape, lambda i: (0, 0)))   # resident params
    in_specs.append(pl.BlockSpec(b_packed.shape, lambda i: (0, 0)))
    out_specs = pl.BlockSpec((1, tile), lambda i: (0, i))

    out_t = pl.pallas_call(
        make_mlp_kernel(layer_dims, chunk),
        out_shape=jax.ShapeDtypeStruct((1, padded_B), jnp.float32),
        grid=grid,
        in_specs=in_specs,
        out_specs=out_specs,
        compiler_params=pltpu.CompilerParams(dimension_semantics=("parallel",)),
    )(x_t, *kweights, b_packed)

    return out_t[0, :B].reshape(B, 1)


def init_params(key, nodes_per_layer, in_features=2, out_features=1):
    """PyTorch-Linear-style init: U(-1/sqrt(fan_in), 1/sqrt(fan_in)).

    Returns torch-convention params: weights[i] is (out_i, in_i), biases[i] is (out_i,).
    """
    dims = [in_features] + list(nodes_per_layer) + [out_features]
    weights, biases = [], []
    for i in range(len(dims) - 1):
        fan_in, fan_out = dims[i], dims[i + 1]
        key, kw, kb = jax.random.split(key, 3)
        bound = 1.0 / jnp.sqrt(jnp.float32(fan_in))
        weights.append(jax.random.uniform(kw, (fan_out, fan_in), jnp.float32, -bound, bound))
        biases.append(jax.random.uniform(kb, (fan_out,), jnp.float32, -bound, bound))
    return weights, biases


def reference_forward(x, weights, biases):
    h = x
    n = len(weights)
    for i, (w, b) in enumerate(zip(weights, biases)):
        h = h @ w.T + b
        if i < n - 1:
            h = jnp.maximum(h, 0.0)
    return h


if __name__ == "__main__":
    key = jax.random.PRNGKey(0)

    # Module hyperparameters (epochs / samplePoints do not affect forward()).
    # TODO(synk): the training loop / optimizer from the original module is out of
    # scope; only the forward pass is implemented as a kernel.
    configs = [
        ([32, 32], 256),       # canonical small case
        ([16, 24, 8], 300),    # odd widths / non-8-aligned bias segments
        ([8], 64),             # single hidden layer (empty MXU loop)
    ]
    for nodes_per_layer, batch in configs:
        key, kx, kp = jax.random.split(key, 3)
        x = jax.random.uniform(kx, (batch, 2), jnp.float32, -1.0, 1.0)
        weights, biases = init_params(kp, nodes_per_layer)

        out = jax.block_until_ready(nn_general_forward(x, weights, biases))
        ref = reference_forward(x, weights, biases)

        assert out.shape == (batch, 1)
        assert jnp.allclose(out, ref, atol=1e-5, rtol=1e-5), (
            f"mismatch vs reference for nodes={nodes_per_layer}")

    print("KERNEL_OK")
</pallas_src>

<mosaic_0001>
module attributes {stable_mosaic.version = 11 : i64} {
  func.func @kernel(%arg0: i32, %arg1: memref<2x512xf32, #tpu.memory_space<vmem>>, %arg2: memref<32x2xf32, #tpu.memory_space<vmem>>, %arg3: memref<32x32xf32, #tpu.memory_space<vmem>>, %arg4: memref<32x1xf32, #tpu.memory_space<vmem>>, %arg5: memref<72x1xf32, #tpu.memory_space<vmem>>, %arg6: memref<1x512xf32, #tpu.memory_space<vmem>>) attributes {dimension_semantics = [#tpu.dimension_semantics<parallel>], iteration_bounds = array<i64: 1>, scalar_prefetch = 0 : i64, scratch_operands = 0 : i64, tpu.core_type = #tpu.core_type<tc>, window_params = [{transform_indices = @transform_0, window_bounds = array<i64: 2, 512>}, {pipeline_mode = #tpu.pipeline_mode<synchronous>, transform_indices = @transform_1, window_bounds = array<i64: 32, 2>}, {pipeline_mode = #tpu.pipeline_mode<synchronous>, transform_indices = @transform_2, window_bounds = array<i64: 32, 32>}, {pipeline_mode = #tpu.pipeline_mode<synchronous>, transform_indices = @transform_3, window_bounds = array<i64: 32, 1>}, {pipeline_mode = #tpu.pipeline_mode<synchronous>, transform_indices = @transform_4, window_bounds = array<i64: 72, 1>}, {transform_indices = @transform_5, window_bounds = array<i64: 1, 512>}]} {
    %c0 = arith.constant 0 : index
    %c0_0 = arith.constant 0 : index
    %0 = vector.load %arg1[%c0, %c0_0] : memref<2x512xf32, #tpu.memory_space<vmem>>, vector<2x512xf32>
    %c0_1 = arith.constant 0 : index
    %c0_2 = arith.constant 0 : index
    %1 = vector.load %arg2[%c0_1, %c0_2] : memref<32x2xf32, #tpu.memory_space<vmem>>, vector<32x2xf32>
    %c0_3 = arith.constant 0 : index
    %c0_4 = arith.constant 0 : index
    %2 = vector.load %arg5[%c0_3, %c0_4] : memref<72x1xf32, #tpu.memory_space<vmem>>, vector<32x1xf32>
    %3 = vector.extract_strided_slice %1 {offsets = [0, 0], sizes = [32, 1], strides = [1, 1]} : vector<32x2xf32> to vector<32x1xf32>
    %4 = vector.extract_strided_slice %0 {offsets = [0, 0], sizes = [1, 512], strides = [1, 1]} : vector<2x512xf32> to vector<1x512xf32>
    %5 = vector.broadcast %3 : vector<32x1xf32> to vector<32x512xf32>
    %6 = vector.broadcast %4 : vector<1x512xf32> to vector<32x512xf32>
    %7 = arith.mulf %5, %6 : vector<32x512xf32>
    %8 = vector.extract_strided_slice %1 {offsets = [0, 1], sizes = [32, 1], strides = [1, 1]} : vector<32x2xf32> to vector<32x1xf32>
    %9 = vector.extract_strided_slice %0 {offsets = [1, 0], sizes = [1, 512], strides = [1, 1]} : vector<2x512xf32> to vector<1x512xf32>
    %10 = vector.broadcast %8 : vector<32x1xf32> to vector<32x512xf32>
    %11 = vector.broadcast %9 : vector<1x512xf32> to vector<32x512xf32>
    %12 = arith.mulf %10, %11 : vector<32x512xf32>
    %13 = arith.addf %7, %12 : vector<32x512xf32>
    %14 = vector.broadcast %2 : vector<32x1xf32> to vector<32x512xf32>
    %15 = arith.addf %13, %14 : vector<32x512xf32>
    %cst = arith.constant 0.000000e+00 : f32
    %16 = vector.broadcast %cst : f32 to vector<32x512xf32>
    %17 = arith.maximumf %15, %16 : vector<32x512xf32>
    %c0_5 = arith.constant 0 : index
    %c0_6 = arith.constant 0 : index
    %18 = vector.load %arg3[%c0_5, %c0_6] : memref<32x32xf32, #tpu.memory_space<vmem>>, vector<32x32xf32>
    %c32 = arith.constant 32 : index
    %c0_7 = arith.constant 0 : index
    %19 = vector.load %arg5[%c32, %c0_7] : memref<72x1xf32, #tpu.memory_space<vmem>>, vector<32x1xf32>
    %cst_8 = arith.constant dense<0.000000e+00> : vector<32x512xf32>
    %20 = tpu.matmul %18, %17, %cst_8 {dimension_numbers = #tpu.dot_dimension_numbers<[1], [0], [0], [1], [0, 0, 1, 1], [], []>} : vector<32x32xf32>, vector<32x512xf32>, vector<32x512xf32> -> vector<32x512xf32>
    %21 = vector.broadcast %19 : vector<32x1xf32> to vector<32x512xf32>
    %22 = arith.addf %20, %21 : vector<32x512xf32>
    %cst_9 = arith.constant 0.000000e+00 : f32
    %23 = vector.broadcast %cst_9 : f32 to vector<32x512xf32>
    %24 = arith.maximumf %22, %23 : vector<32x512xf32>
    %c0_10 = arith.constant 0 : index
    %c0_11 = arith.constant 0 : index
    %25 = vector.load %arg4[%c0_10, %c0_11] : memref<32x1xf32, #tpu.memory_space<vmem>>, vector<32x1xf32>
    %c64 = arith.constant 64 : index
    %c0_12 = arith.constant 0 : index
    %26 = vector.load %arg5[%c64, %c0_12] : memref<72x1xf32, #tpu.memory_space<vmem>>, vector<1x1xf32>
    %27 = vector.broadcast %25 : vector<32x1xf32> to vector<32x512xf32>
    %28 = arith.mulf %27, %24 : vector<32x512xf32>
    %cst_13 = arith.constant dense<0.000000e+00> : vector<512xf32>
    %29 = vector.multi_reduction <add>, %28, %cst_13 [0] : vector<32x512xf32> to vector<512xf32>
    %30 = vector.shape_cast %29 : vector<512xf32> to vector<1x512xf32>
    %31 = vector.broadcast %26 : vector<1x1xf32> to vector<1x512xf32>
    %32 = arith.addf %30, %31 : vector<1x512xf32>
    %c0_14 = arith.constant 0 : index
    %c0_15 = arith.constant 0 : index
    %33 = vector.load %arg6[%c0_14, %c0_15] : memref<1x512xf32, #tpu.memory_space<vmem>>, vector<1x512xf32>
    tpu.vector_store %arg6[%c0_14, %c0_15], %32 {strides = array<i32>} : memref<1x512xf32, #tpu.memory_space<vmem>>, vector<1x512xf32>,
    return
  }
  func.func @transform_0(%arg0: i32) -> (i32, i32) {
    %c0_i32 = arith.constant 0 : i32
    %c0_i32_0 = arith.constant 0 : i32
    return %c0_i32, %arg0 : i32, i32
  }
  func.func @transform_1(%arg0: i32) -> (i32, i32) {
    %c0_i32 = arith.constant 0 : i32
    %c0_i32_0 = arith.constant 0 : i32
    %c0_i32_1 = arith.constant 0 : i32
    return %c0_i32, %c0_i32_0 : i32, i32
  }
  func.func @transform_2(%arg0: i32) -> (i32, i32) {
    %c0_i32 = arith.constant 0 : i32
    %c0_i32_0 = arith.constant 0 : i32
    %c0_i32_1 = arith.constant 0 : i32
    return %c0_i32, %c0_i32_0 : i32, i32
  }
  func.func @transform_3(%arg0: i32) -> (i32, i32) {
    %c0_i32 = arith.constant 0 : i32
    %c0_i32_0 = arith.constant 0 : i32
    %c0_i32_1 = arith.constant 0 : i32
    return %c0_i32, %c0_i32_0 : i32, i32
  }
  func.func @transform_4(%arg0: i32) -> (i32, i32) {
    %c0_i32 = arith.constant 0 : i32
    %c0_i32_0 = arith.constant 0 : i32
    %c0_i32_1 = arith.constant 0 : i32
    return %c0_i32, %c0_i32_0 : i32, i32
  }
  func.func @transform_5(%arg0: i32) -> (i32, i32) {
    %c0_i32 = arith.constant 0 : i32
    %c0_i32_0 = arith.constant 0 : i32
    return %c0_i32, %arg0 : i32, i32
  }
}

</mosaic_0001>

<llo_original>
// kernel: tpu_custom_call.1
$region0: #{tpu_custom_call.1}
  #allocation0 [shape = 'u32[]', space=smem, size = 0x4, offset = 0x4, fixed_abs, tag = 'smem constant byte address 0x4 - core index']
  #allocation1 [shape = 'u32[72,128]{1,0:T(1,128)}', space=vmem, size = 0x9000, scoped, tag = 'internal scratch']
  %s0 = inlined_call_operand.vmem [shape: f32[2,512], index: 0, kind: input, shape index: {}]
  %s1 = inlined_call_operand.vmem [shape: f32[32,2], index: 1, kind: input, shape index: {}]
  %s2 = inlined_call_operand.vmem [shape: f32[32,32], index: 2, kind: input, shape index: {}]
  %s3 = inlined_call_operand.vmem [shape: f32[32,1], index: 3, kind: input, shape index: {}]
  %s4 = inlined_call_operand.vmem [shape: f32[72,1], index: 4, kind: input, shape index: {}]
  %s5 = inlined_call_operand.hbm [shape: f32[1,512], index: 5, kind: output, shape index: {}]
  %s6 = sld [smem:[#allocation0]]
  $region30: #{tpu_custom_call.1} parent=0
    _
  %s8 = ssub.s32 1, %s6
  %s9 = scalar_select 0, %s8, %s6
  $region1: #{tpu_custom_call.1} parent=0
    #allocation2 [shape = 'u8[2048]{0}', space=vmem, size = 0x800, scoped, tag = 'output window, operand 0, single buffered']
    #allocation3 [shape = 's32[1]{0}', space=sflag, size = 0x4, scoped, tag = 'scoped memory for tpu_custom_call.1']
    %10 = vsyncpa [#allocation3], 0
    // Predicated region
    $region2: #{tpu_custom_call.1} parent=1 // pred_check
      _
    $region3: #{tpu_custom_call.1} parent=1 // pred_check_branch
      %12 = sbr.rel (0) target = $region5
    $region4: #{tpu_custom_call.1} parent=1 // pred_region
      _
    $region5: #{tpu_custom_call.1} parent=1 // pred_fallthru
      _
    // Predicated region
    $region6: #{tpu_custom_call.1} parent=1 // pred_check
      _
    $region7: #{tpu_custom_call.1} parent=1 // pred_check_branch
      %14 = sbr.rel (0) target = $region9
    $region8: #{tpu_custom_call.1} parent=1 // pred_region
      _
    $region9: #{tpu_custom_call.1} parent=1 // pred_fallthru
      _
    // Predicated region
    $region10: #{tpu_custom_call.1} parent=1 // pred_check
      _
    $region11: #{tpu_custom_call.1} parent=1 // pred_check_branch
      %16 = sbr.rel (0) target = $region13
    $region12: #{tpu_custom_call.1} parent=1 // pred_region
      _
    $region13: #{tpu_custom_call.1} parent=1 // pred_fallthru
      _
    // Predicated region
    $region14: #{tpu_custom_call.1} parent=1 // pred_check
      _
    $region15: #{tpu_custom_call.1} parent=1 // pred_check_branch
      %18 = sbr.rel (0) target = $region17
    $region16: #{tpu_custom_call.1} parent=1 // pred_region
      _
    $region17: #{tpu_custom_call.1} parent=1 // pred_fallthru
      _
    // Predicated region
    $region18: #{tpu_custom_call.1} parent=1 // pred_check
      _
    $region19: #{tpu_custom_call.1} parent=1 // pred_check_branch
      %20 = sbr.rel (0) target = $region21
    $region20: #{tpu_custom_call.1} parent=1 // pred_region
      _
    $region21: #{tpu_custom_call.1} parent=1 // pred_fallthru
      _
    %v21 = vld [vmem:[%s0] sm:$0xff]
    %v22 = vld [vmem:[%s1] sm:$0xff]
    %v23 = vld [vmem:[%s1 + $0x8] sm:$0xff]
    %v24 = vld [vmem:[%s1 + $0x10] sm:$0xff]
    %v25 = vld [vmem:[%s1 + $0x18] sm:$0xff]
    %v26 = vld [vmem:[%s4] sm:$0xff]
    %v27 = vld [vmem:[%s4 + $0x8] sm:$0xff]
    %v28 = vld [vmem:[%s4 + $0x10] sm:$0xff]
    %v29 = vld [vmem:[%s4 + $0x18] sm:$0xff]
    %31 = vset.pattern.permute.xlu0 0
    %32 = vperm.xlu0 %31, %v22
    %v33 = vpop.permute.xlu0 %32
    %36 = vset.pattern.permute.xlu0 0
    %37 = vperm.xlu0 %36, %v23
    %v38 = vpop.permute.xlu0 %37
    %41 = vset.pattern.permute.xlu0 0
    %42 = vperm.xlu0 %41, %v24
    %v43 = vpop.permute.xlu0 %42
    %46 = vset.pattern.permute.xlu0 0
    %47 = vperm.xlu0 %46, %v25
    %v48 = vpop.permute.xlu0 %47
    %v51 = vperm.slane %v21, 0
    %v52 = vperm.slane %v21, 2
    %v53 = vperm.slane %v21, 4
    %v54 = vperm.slane %v21, 6
    %v59 = vperm.slane %v51, 0
    %v60 = vperm.slane %v52, 0
    %v61 = vperm.slane %v53, 0
    %v62 = vperm.slane %v54, 0
    %v63 = vmul.f32 %v33, %v59
    %v64 = vmul.f32 %v33, %v60
    %v65 = vmul.f32 %v33, %v61
    %v66 = vmul.f32 %v33, %v62
    %v67 = vmul.f32 %v38, %v59
    %v68 = vmul.f32 %v38, %v60
    %v69 = vmul.f32 %v38, %v61
    %v70 = vmul.f32 %v38, %v62
    %v71 = vmul.f32 %v43, %v59
    %v72 = vmul.f32 %v43, %v60
    %v73 = vmul.f32 %v43, %v61
    %v74 = vmul.f32 %v43, %v62
    %v75 = vmul.f32 %v48, %v59
    %v76 = vmul.f32 %v48, %v60
    %v77 = vmul.f32 %v48, %v61
    %v78 = vmul.f32 %v48, %v62
    %79 = vset.pattern.permute.xlu0 1
    %80 = vperm.xlu0 %79, %v22
    %v81 = vpop.permute.xlu0 %80
    %83 = vset.pattern.permute.xlu0 1
    %84 = vperm.xlu0 %83, %v23
    %v85 = vpop.permute.xlu0 %84
    %87 = vset.pattern.permute.xlu0 1
    %88 = vperm.xlu0 %87, %v24
    %v89 = vpop.permute.xlu0 %88
    %91 = vset.pattern.permute.xlu0 1
    %92 = vperm.xlu0 %91, %v25
    %v93 = vpop.permute.xlu0 %92
    %v95 = vperm.slane %v21, 1
    %v96 = vperm.slane %v21, 3
    %v97 = vperm.slane %v21, 5
    %v98 = vperm.slane %v21, 7
    %v103 = vperm.slane %v95, 1
    %v104 = vperm.slane %v96, 1
    %v105 = vperm.slane %v97, 1
    %v106 = vperm.slane %v98, 1
    %v107 = vmul.f32 %v81, %v103
    %v108 = vmul.f32 %v81, %v104
    %v109 = vmul.f32 %v81, %v105
    %v110 = vmul.f32 %v81, %v106
    %v111 = vmul.f32 %v85, %v103
    %v112 = vmul.f32 %v85, %v104
    %v113 = vmul.f32 %v85, %v105
    %v114 = vmul.f32 %v85, %v106
    %v115 = vmul.f32 %v89, %v103
    %v116 = vmul.f32 %v89, %v104
    %v117 = vmul.f32 %v89, %v105
    %v118 = vmul.f32 %v89, %v106
    %v119 = vmul.f32 %v93, %v103
    %v120 = vmul.f32 %v93, %v104
    %v121 = vmul.f32 %v93, %v105
    %v122 = vmul.f32 %v93, %v106
    %v123 = vadd.f32 %v63, %v107
    %v124 = vadd.f32 %v64, %v108
    %v125 = vadd.f32 %v65, %v109
    %v126 = vadd.f32 %v66, %v110
    %v127 = vadd.f32 %v67, %v111
    %v128 = vadd.f32 %v68, %v112
    %v129 = vadd.f32 %v69, %v113
    %v130 = vadd.f32 %v70, %v114
    %v131 = vadd.f32 %v71, %v115
    %v132 = vadd.f32 %v72, %v116
    %v133 = vadd.f32 %v73, %v117
    %v134 = vadd.f32 %v74, %v118
    %v135 = vadd.f32 %v75, %v119
    %v136 = vadd.f32 %v76, %v120
    %v137 = vadd.f32 %v77, %v121
    %v138 = vadd.f32 %v78, %v122
    %140 = vset.pattern.permute.xlu0 0
    %141 = vperm.xlu0 %140, %v26
    %v142 = vpop.permute.xlu0 %141
    %145 = vset.pattern.permute.xlu0 0
    %146 = vperm.xlu0 %145, %v27
    %v147 = vpop.permute.xlu0 %146
    %150 = vset.pattern.permute.xlu0 0
    %151 = vperm.xlu0 %150, %v28
    %v152 = vpop.permute.xlu0 %151
    %155 = vset.pattern.permute.xlu0 0
    %156 = vperm.xlu0 %155, %v29
    %v157 = vpop.permute.xlu0 %156
    %v159 = vadd.f32 %v123, %v142
    %v160 = vadd.f32 %v124, %v142
    %v161 = vadd.f32 %v125, %v142
    %v162 = vadd.f32 %v126, %v142
    %v163 = vadd.f32 %v127, %v147
    %v164 = vadd.f32 %v128, %v147
    %v165 = vadd.f32 %v129, %v147
    %v166 = vadd.f32 %v130, %v147
    %v167 = vadd.f32 %v131, %v152
    %v168 = vadd.f32 %v132, %v152
    %v169 = vadd.f32 %v133, %v152
    %v170 = vadd.f32 %v134, %v152
    %v171 = vadd.f32 %v135, %v157
    %v172 = vadd.f32 %v136, %v157
    %v173 = vadd.f32 %v137, %v157
    %v174 = vadd.f32 %v138, %v157
    %v175 = vmax.f32 %v159, 0.0
    %v176 = vmax.f32 %v160, 0.0
    %v177 = vmax.f32 %v161, 0.0
    %v178 = vmax.f32 %v162, 0.0
    %v179 = vmax.f32 %v163, 0.0
    %v180 = vmax.f32 %v164, 0.0
    %v181 = vmax.f32 %v165, 0.0
    %v182 = vmax.f32 %v166, 0.0
    %v183 = vmax.f32 %v167, 0.0
    %v184 = vmax.f32 %v168, 0.0
    %v185 = vmax.f32 %v169, 0.0
    %v186 = vmax.f32 %v170, 0.0
    %v187 = vmax.f32 %v171, 0.0
    %v188 = vmax.f32 %v172, 0.0
    %v189 = vmax.f32 %v173, 0.0
    %v190 = vmax.f32 %v174, 0.0
    %v191 = vld [vmem:[%s2] sm:$0xff]
    %v192 = vld [vmem:[%s2 + $0x8] sm:$0xff]
    %v193 = vld [vmem:[%s2 + $0x10] sm:$0xff]
    %v194 = vld [vmem:[%s2 + $0x18] sm:$0xff]
    %v195 = vld [vmem:[%s4 + $0x20] sm:$0xff]
    %v196 = vld [vmem:[%s4 + $0x28] sm:$0xff]
    %v197 = vld [vmem:[%s4 + $0x30] sm:$0xff]
    %v198 = vld [vmem:[%s4 + $0x38] sm:$0xff]
    %200 = vset.pattern.permute.xlu0 0
    %201 = vperm.xlu0 %200, %v195
    %v202 = vpop.permute.xlu0 %201
    %205 = vset.pattern.permute.xlu0 0
    %206 = vperm.xlu0 %205, %v196
    %v207 = vpop.permute.xlu0 %206
    %210 = vset.pattern.permute.xlu0 0
    %211 = vperm.xlu0 %210, %v197
    %v212 = vpop.permute.xlu0 %211
    %215 = vset.pattern.permute.xlu0 0
    %216 = vperm.xlu0 %215, %v198
    %v217 = vpop.permute.xlu0 %216
    %vm219 = vcmask 261120
    %v221 = vsel %vm219, %v191, 0
    %v224 = vsel %vm219, %v192, 0
    %v227 = vsel %vm219, %v193, 0
    %v230 = vsel %vm219, %v194, 0
    %232 = vmatpush.msra.mxu0 0.0
    %233 = vmatpush.msra.mxu0 0.0
    %234 = vmatpush.msra.mxu0 0.0
    %235 = vmatpush.msra.mxu0 0.0
    %236 = vmatpush.msra.mxu0 0.0
    %237 = vmatpush.msra.mxu0 0.0
    %238 = vmatpush.msra.mxu0 0.0
    %239 = vmatpush.msra.mxu0 0.0
    %240 = vmatpush.msra.mxu0 0.0
    %241 = vmatpush.msra.mxu0 0.0
    %242 = vmatpush.msra.mxu0 0.0
    %243 = vmatpush.msra.mxu0 0.0
    %244 = vmatpush.msra.mxu0 %v187
    %245 = vmatpush.msra.mxu0 %v183
    %246 = vmatpush.msra.mxu0 %v179
    %247 = vmatpush.msra.mxu0 %v175
    %248 = vmatmul.f32.gmra.mxu0 %v221
    %v249 = vpop.f32.mrf.mxu0
    %v250 = vadd.f32 %v202, %v249
    %251 = vmatmul.f32.gmra.mxu0 %v224
    %v252 = vpop.f32.mrf.mxu0
    %v253 = vadd.f32 %v207, %v252
    %254 = vmatmul.f32.gmra.mxu0 %v227
    %v255 = vpop.f32.mrf.mxu0
    %v256 = vadd.f32 %v212, %v255
    %257 = vmatmul.f32.gmra.mxu0 %v230
    %v258 = vpop.f32.mrf.mxu0
    %v259 = vadd.f32 %v217, %v258
    %260 = vdwg.mxu0
    %261 = vmatpush.msra.mxu0 0.0
    %262 = vmatpush.msra.mxu0 0.0
    %263 = vmatpush.msra.mxu0 0.0
    %264 = vmatpush.msra.mxu0 0.0
    %265 = vmatpush.msra.mxu0 0.0
    %266 = vmatpush.msra.mxu0 0.0
    %267 = vmatpush.msra.mxu0 0.0
    %268 = vmatpush.msra.mxu0 0.0
    %269 = vmatpush.msra.mxu0 0.0
    %270 = vmatpush.msra.mxu0 0.0
    %271 = vmatpush.msra.mxu0 0.0
    %272 = vmatpush.msra.mxu0 0.0
    %273 = vmatpush.msra.mxu0 %v188
    %274 = vmatpush.msra.mxu0 %v184
    %275 = vmatpush.msra.mxu0 %v180
    %276 = vmatpush.msra.mxu0 %v176
    %277 = vmatmul.f32.gmra.mxu0 %v221
    %v278 = vpop.f32.mrf.mxu0
    %v279 = vadd.f32 %v202, %v278
    %280 = vmatmul.f32.gmra.mxu0 %v224
    %v281 = vpop.f32.mrf.mxu0
    %v282 = vadd.f32 %v207, %v281
    %283 = vmatmul.f32.gmra.mxu0 %v227
    %v284 = vpop.f32.mrf.mxu0
    %v285 = vadd.f32 %v212, %v284
    %286 = vmatmul.f32.gmra.mxu0 %v230
    %v287 = vpop.f32.mrf.mxu0
    %v288 = vadd.f32 %v217, %v287
    %289 = vdwg.mxu0
    %290 = vmatpush.msra.mxu0 0.0
    %291 = vmatpush.msra.mxu0 0.0
    %292 = vmatpush.msra.mxu0 0.0
    %293 = vmatpush.msra.mxu0 0.0
    %294 = vmatpush.msra.mxu0 0.0
    %295 = vmatpush.msra.mxu0 0.0
    %296 = vmatpush.msra.mxu0 0.0
    %297 = vmatpush.msra.mxu0 0.0
    %298 = vmatpush.msra.mxu0 0.0
    %299 = vmatpush.msra.mxu0 0.0
    %300 = vmatpush.msra.mxu0 0.0
    %301 = vmatpush.msra.mxu0 0.0
    %302 = vmatpush.msra.mxu0 %v189
    %303 = vmatpush.msra.mxu0 %v185
    %304 = vmatpush.msra.mxu0 %v181
    %305 = vmatpush.msra.mxu0 %v177
    %306 = vmatmul.f32.gmra.mxu0 %v221
    %v307 = vpop.f32.mrf.mxu0
    %v308 = vadd.f32 %v202, %v307
    %309 = vmatmul.f32.gmra.mxu0 %v224
    %v310 = vpop.f32.mrf.mxu0
    %v311 = vadd.f32 %v207, %v310
    %312 = vmatmul.f32.gmra.mxu0 %v227
    %v313 = vpop.f32.mrf.mxu0
    %v314 = vadd.f32 %v212, %v313
    %315 = vmatmul.f32.gmra.mxu0 %v230
    %v316 = vpop.f32.mrf.mxu0
    %v317 = vadd.f32 %v217, %v316
    %318 = vdwg.mxu0
    %319 = vmatpush.msra.mxu0 0.0
    %320 = vmatpush.msra.mxu0 0.0
    %321 = vmatpush.msra.mxu0 0.0
    %322 = vmatpush.msra.mxu0 0.0
    %323 = vmatpush.msra.mxu0 0.0
    %324 = vmatpush.msra.mxu0 0.0
    %325 = vmatpush.msra.mxu0 0.0
    %326 = vmatpush.msra.mxu0 0.0
    %327 = vmatpush.msra.mxu0 0.0
    %328 = vmatpush.msra.mxu0 0.0
    %329 = vmatpush.msra.mxu0 0.0
    %330 = vmatpush.msra.mxu0 0.0
    %331 = vmatpush.msra.mxu0 %v190
    %332 = vmatpush.msra.mxu0 %v186
    %333 = vmatpush.msra.mxu0 %v182
    %334 = vmatpush.msra.mxu0 %v178
    %335 = vmatmul.f32.gmra.mxu0 %v221
    %v336 = vpop.f32.mrf.mxu0
    %v337 = vadd.f32 %v202, %v336
    %338 = vmatmul.f32.gmra.mxu0 %v224
    %v339 = vpop.f32.mrf.mxu0
    %v340 = vadd.f32 %v207, %v339
    %341 = vmatmul.f32.gmra.mxu0 %v227
    %v342 = vpop.f32.mrf.mxu0
    %v343 = vadd.f32 %v212, %v342
    %344 = vmatmul.f32.gmra.mxu0 %v230
    %v345 = vpop.f32.mrf.mxu0
    %v346 = vadd.f32 %v217, %v345
    %347 = vdwg.mxu0
    %v348 = vmax.f32 %v250, 0.0
    %v349 = vmax.f32 %v279, 0.0
    %v350 = vmax.f32 %v308, 0.0
    %v351 = vmax.f32 %v337, 0.0
    %v352 = vmax.f32 %v253, 0.0
    %v353 = vmax.f32 %v282, 0.0
    %v354 = vmax.f32 %v311, 0.0
    %v355 = vmax.f32 %v340, 0.0
    %v356 = vmax.f32 %v256, 0.0
    %v357 = vmax.f32 %v285, 0.0
    %v358 = vmax.f32 %v314, 0.0
    %v359 = vmax.f32 %v343, 0.0
    %v360 = vmax.f32 %v259, 0.0
    %v361 = vmax.f32 %v288, 0.0
    %v362 = vmax.f32 %v317, 0.0
    %v363 = vmax.f32 %v346, 0.0
    %v364 = vld [vmem:[%s3] sm:$0xff]
    %v365 = vld [vmem:[%s3 + $0x8] sm:$0xff]
    %v366 = vld [vmem:[%s3 + $0x10] sm:$0xff]
    %v367 = vld [vmem:[%s3 + $0x18] sm:$0xff]
    %v368 = vld [vmem:[%s4 + $0x40] sm:$0x1]
    %370 = vset.pattern.permute.xlu0 0
    %371 = vperm.xlu0 %370, %v364
    %v372 = vpop.permute.xlu0 %371
    %375 = vset.pattern.permute.xlu0 0
    %376 = vperm.xlu0 %375, %v365
    %v377 = vpop.permute.xlu0 %376
    %380 = vset.pattern.permute.xlu0 0
    %381 = vperm.xlu0 %380, %v366
    %v382 = vpop.permute.xlu0 %381
    %385 = vset.pattern.permute.xlu0 0
    %386 = vperm.xlu0 %385, %v367
    %v387 = vpop.permute.xlu0 %386
    %v389 = vmul.f32 %v372, %v348
    %v390 = vmul.f32 %v372, %v349
    %v391 = vmul.f32 %v372, %v350
    %v392 = vmul.f32 %v372, %v351
    %v393 = vmul.f32 %v377, %v352
    %v394 = vmul.f32 %v377, %v353
    %v395 = vmul.f32 %v377, %v354
    %v396 = vmul.f32 %v377, %v355
    %v397 = vmul.f32 %v382, %v356
    %v398 = vmul.f32 %v382, %v357
    %v399 = vmul.f32 %v382, %v358
    %v400 = vmul.f32 %v382, %v359
    %v401 = vmul.f32 %v387, %v360
    %v402 = vmul.f32 %v387, %v361
    %v403 = vmul.f32 %v387, %v362
    %v404 = vmul.f32 %v387, %v363
    %v405 = vadd.f32 %v389, %v393
    %v406 = vadd.f32 %v405, %v397
    %v407 = vadd.f32 %v406, %v401
    %v408 = vrot.slane %v407, 4
    %v409 = vadd.f32 %v407, %v408
    %v410 = vrot.slane %v409, 2
    %v411 = vadd.f32 %v409, %v410
    %v412 = vrot.slane %v411, 1
    %v413 = vadd.f32 %v411, %v412
    %v414 = vadd.f32 %v390, %v394
    %v415 = vadd.f32 %v414, %v398
    %v416 = vadd.f32 %v415, %v402
    %v417 = vrot.slane %v416, 4
    %v418 = vadd.f32 %v416, %v417
    %v419 = vrot.slane %v418, 2
    %v420 = vadd.f32 %v418, %v419
    %v421 = vrot.slane %v420, 1
    %v422 = vadd.f32 %v420, %v421
    %v423 = vadd.f32 %v391, %v395
    %v424 = vadd.f32 %v423, %v399
    %v425 = vadd.f32 %v424, %v403
    %v426 = vrot.slane %v425, 4
    %v427 = vadd.f32 %v425, %v426
    %v428 = vrot.slane %v427, 2
    %v429 = vadd.f32 %v427, %v428
    %v430 = vrot.slane %v429, 1
    %v431 = vadd.f32 %v429, %v430
    %v432 = vadd.f32 %v392, %v396
    %v433 = vadd.f32 %v432, %v400
    %v434 = vadd.f32 %v433, %v404
    %v435 = vrot.slane %v434, 4
    %v436 = vadd.f32 %v434, %v435
    %v437 = vrot.slane %v436, 2
    %v438 = vadd.f32 %v436, %v437
    %v439 = vrot.slane %v438, 1
    %v440 = vadd.f32 %v438, %v439
    %442 = vset.pattern.permute.xlu0 0
    %443 = vperm.xlu0 %442, %v368
    %v444 = vpop.permute.xlu0 %443
    %v446 = vadd.f32 %v413, %v444
    %v447 = vadd.f32 %v422, %v444
    %v448 = vadd.f32 %v431, %v444
    %v449 = vadd.f32 %v440, %v444
    %v454 = vrot.slane %v447, 7
    %v455 = vrot.slane %v448, 6
    %v456 = vrot.slane %v449, 5
    %vm457 = vcmask 1040384
    %v458 = vsel %vm457, %v446, %v454
    %vm459 = vcmask 1042434
    %v460 = vsel %vm459, %v455, %v456
    %vm461 = vcmask 1041408
    %v462 = vsel %vm461, %v458, %v460
    %v464 = vlaneseq
    %vm465 = vcmp.ge.s32.totalorder %v464, 0
    %vm466 = vcmp.lt.s32.totalorder %v464, 512
    %vm467 = vmand %vm465, %vm466
    %468 = vst.msk [vmem:[#allocation2] sm:$0xf] %vm467, %v462
    // Predicated region
    $region22: #{tpu_custom_call.1} parent=1 // pred_check
      _
    $region23: #{tpu_custom_call.1} parent=1 // pred_check_branch
      %470 = sbr.rel (0) target = $region25
    $region24: #{tpu_custom_call.1} parent=1 // pred_region
      %472 = vsyncadd [#allocation3], 0
      %s474 = sshll.u32 [#allocation2], 4
      %s475 = int_to_ptr.vmem [resolvable:$true] %s474
      %s476 = sshll.u32 %s5, 4
      %s477 = int_to_ptr.hbm [resolvable:$true] %s476
      %479 = dma.vmem_to_hbm [thread:$0]  %s475, 64, %s477, [#allocation3]
    $region25: #{tpu_custom_call.1} parent=1 // pred_fallthru
      _
    // Predicated region
    $region26: #{tpu_custom_call.1} parent=1 // pred_check
      _
    $region27: #{tpu_custom_call.1} parent=1 // pred_check_branch
      %481 = sbr.rel (0) target = $region29
    $region28: #{tpu_custom_call.1} parent=1 // pred_region
      %483 = dma.done [#allocation3], 64
    $region29: #{tpu_custom_call.1} parent=1 // pred_fallthru
      _
    %484 = vsyncpa [#allocation3], 1

</llo_original>
